<compile_context>
chip_gen: v7x
topology: tpu7x:2x2x1
jax: 0.10.0
libtpu: 0.0.40
codegen_flags: <defaults>
</compile_context>

<pallas_src>
import functools
import math

import jax
import jax.numpy as jnp
import numpy as np
from jax import lax
from jax.experimental import pallas as pl
from jax.experimental.pallas import tpu as pltpu

KS = 3
NF = KS * KS  # 9 framelet filters per input channel


def _framelet_1d_bank():
    # 1-D piecewise-linear framelet filters; the 2-D bank is outer(h[i], h[j]).
    s = math.sqrt(2.0) / 4.0
    return (
        (0.25, 0.5, 0.25),
        (s, 0.0, -s),
        (-0.25, 0.5, -0.25),
    )


def _full_bank(h):
    # (9, 3, 3) bank, f = i*3 + j, filter[ki, kj] = h[i][ki] * h[j][kj].
    h = np.asarray(h, np.float64)
    return np.stack([np.outer(h[i], h[j]) for i in range(3) for j in range(3)]).astype(
        np.float32
    )


def make_weights(h, channel):
    # PyTorch grouped-conv weight layout: (channel*9, 1, 3, 3).
    filts = _full_bank(h)
    w = np.tile(filts[None], (channel, 1, 1, 1))
    return jnp.asarray(w.reshape(channel * NF, 1, KS, KS))


def _framelet_dec_kernel(x_ref, o_ref, *, C, H, W, nb, h, transpose):
    # x_ref: VMEM f32[nb*C, H*W]  (nb batches, sublane-packed channels)
    # o_ref: VMEM [nb, NF*C, HW]  if transpose  (channel index f*C + c)
    #        VMEM [nb*C, NF*HW]   otherwise     (channel index c*NF + f)
    HW = H * W
    x = x_ref[...]  # (R, HW), R = nb*C, lane- and sublane-dense
    R = x.shape[0]

    # Hoisted border masks (built once per grid step).
    pos = lax.broadcasted_iota(jnp.int32, (R, HW), 1)
    if W & (W - 1) == 0:
        col = jnp.bitwise_and(pos, W - 1)
    else:
        col = pos % W
    m_up = pos >= W                 # row above exists
    m_down = pos < (H - 1) * W      # row below exists
    m_left = col >= 1               # column to the left exists
    m_right = col <= W - 2          # column to the right exists

    zero = jnp.zeros_like(x)

    def shift(v, amt, mask):
        # value at flat position p comes from p - amt (zero where out of bounds)
        a = amt % HW
        s = v if a == 0 else pltpu.roll(v, a, axis=1)
        return jnp.where(mask, s, 0.0)

    def fir(taps, terms):
        acc = None
        for wv, t in zip(taps, terms):
            wv = float(wv)
            if wv == 0.0:
                continue
            term = t if wv == 1.0 else wv * t
            acc = term if acc is None else acc + term
        return zero if acc is None else acc

    # ---- Vertical (row) pass: 3 intermediates -------------------------------
    up = shift(x, W, m_up)        # x[y-1, :]
    down = shift(x, -W, m_down)   # x[y+1, :]
    t = [fir(h[i], (up, x, down)) for i in range(3)]

    # ---- Horizontal (column) pass: 9 outputs --------------------------------
    accs = []
    for i in range(3):
        ti = t[i]
        left = shift(ti, 1, m_left)     # ti[:, x-1]
        right = shift(ti, -1, m_right)  # ti[:, x+1]
        for j in range(3):
            accs.append(fir(h[j], (left, ti, right)))  # filter f = i*3 + j

    odt = o_ref.dtype
    if transpose:
        # Per batch, interleave filters/channels in-register and do one dense
        # (NF*C, HW) store (no per-filter masked sublane stores).
        for b in range(nb):
            o_ref[b] = jnp.concatenate(
                [accs[f][b * C:(b + 1) * C] for f in range(NF)], axis=0
            ).astype(odt)
    else:
        # Each filter is a lane-aligned 256-lane slab -> full unmasked stores.
        for f in range(NF):
            o_ref[:, f * HW:(f + 1) * HW] = accs[f].astype(odt)


def framelet_transform(x, h, transpose=True, out_dtype=None):
    """Forward pass of FrameletTransform with dec=True.

    x: (N, C, H, W) float32
    h: (3, 3) separable 1-D framelet bank (full bank is outer(h[i], h[j]),
       identical per channel as in the original module's tiled weight).
    returns (N, C*9, H, W); channel index = f*C + c if transpose else c*9 + f.
    """
    N, C, H, W = x.shape
    HW = H * W
    h = tuple(tuple(float(v) for v in row) for row in np.asarray(h, np.float64))
    odt = x.dtype if out_dtype is None else out_dtype

    # Batches per block: smallest nb with nb*C a multiple of 8 (packed
    # sublanes) and N % nb == 0; falls back to a single block otherwise.
    nb = None
    for cand in range(1, N + 1):
        if N % cand == 0 and (cand * C) % 8 == 0:
            nb = cand
            break
    if nb is None:
        nb = N
    G = N // nb  # grid steps (1 at the shipped shapes; >=2 for larger N -> megacore)

    x_flat = x.reshape(N * C, HW)  # contiguous -> free metadata reshape

    kernel = functools.partial(
        _framelet_dec_kernel, C=C, H=H, W=W, nb=nb, h=h, transpose=transpose
    )

    if transpose:
        out_shape = jax.ShapeDtypeStruct((N, NF * C, HW), odt)
        out_spec = pl.BlockSpec((nb, NF * C, HW), lambda g: (g, 0, 0))
    else:
        out_shape = jax.ShapeDtypeStruct((N * C, NF * HW), odt)
        out_spec = pl.BlockSpec((nb * C, NF * HW), lambda g: (g, 0))

    out = pl.pallas_call(
        kernel,
        out_shape=out_shape,
        grid=(G,),
        in_specs=[pl.BlockSpec((nb * C, HW), lambda g: (g, 0))],
        out_specs=out_spec,
        compiler_params=pltpu.CompilerParams(
            dimension_semantics=("parallel",)
        ),
    )(x_flat)

    # Both layouts match the target channel order in row-major memory, so the
    # final 4-D views are free metadata reshapes (no extra XLA transpose op).
    return out.reshape(N, C * NF, H, W)


def _reference(x, weight, channel, transpose=True):
    # Pure-JAX reference of the PyTorch forward (grouped conv + view/transpose).
    N, C, H, W = x.shape
    out = lax.conv_general_dilated(
        x,
        weight,
        window_strides=(1, 1),
        padding=((1, 1), (1, 1)),
        dimension_numbers=("NCHW", "OIHW", "NCHW"),
        feature_group_count=channel,
    )  # (N, C*9, H, W), channel index c*9 + f
    if transpose:
        out = (
            out.reshape(N, channel, NF, H, W)
            .transpose(0, 2, 1, 3, 4)
            .reshape(N, channel * NF, H, W)
        )
    return out


if __name__ == "__main__":
    channel = 4
    N, H, W = 2, 16, 16

    key = jax.random.PRNGKey(0)
    x = jax.random.normal(key, (N, channel, H, W), dtype=jnp.float32)

    h = _framelet_1d_bank()              # deterministic separable bank
    weight = make_weights(h, channel)    # (36, 1, 3, 3) PyTorch layout

    for transpose in (True, False):
        out = jax.block_until_ready(
            framelet_transform(x, h, transpose=transpose)
        )
        ref = jax.block_until_ready(
            _reference(x, weight, channel, transpose=transpose)
        )
        assert out.shape == (N, channel * NF, H, W), out.shape
        np.testing.assert_allclose(
            np.asarray(out), np.asarray(ref), atol=1e-4, rtol=1e-4
        )

    print("KERNEL_OK")
</pallas_src>

<mosaic_0001>
module attributes {stable_mosaic.version = 11 : i64} {
  func.func @_framelet_dec_kernel(%arg0: i32, %arg1: memref<8x256xf32, #tpu.memory_space<vmem>>, %arg2: memref<2x36x256xf32, #tpu.memory_space<vmem>>) attributes {dimension_semantics = [#tpu.dimension_semantics<parallel>], iteration_bounds = array<i64: 1>, scalar_prefetch = 0 : i64, scratch_operands = 0 : i64, tpu.core_type = #tpu.core_type<tc>, window_params = [{transform_indices = @transform_0, window_bounds = array<i64: 8, 256>}, {transform_indices = @transform_1, window_bounds = array<i64: 2, 36, 256>}]} {
    %c0 = arith.constant 0 : index
    %c0_0 = arith.constant 0 : index
    %0 = vector.load %arg1[%c0, %c0_0] : memref<8x256xf32, #tpu.memory_space<vmem>>, vector<8x256xf32>
    %1 = tpu.iota {dimensions = array<i32: 1>} : vector<8x256xi32>
    %c15_i32 = arith.constant 15 : i32
    %2 = vector.broadcast %c15_i32 : i32 to vector<8x256xi32>
    %3 = arith.andi %1, %2 : vector<8x256xi32>
    %c16_i32 = arith.constant 16 : i32
    %4 = vector.broadcast %c16_i32 : i32 to vector<8x256xi32>
    %5 = arith.cmpi sge, %1, %4 : vector<8x256xi32>
    %c240_i32 = arith.constant 240 : i32
    %6 = vector.broadcast %c240_i32 : i32 to vector<8x256xi32>
    %7 = arith.cmpi slt, %1, %6 : vector<8x256xi32>
    %c1_i32 = arith.constant 1 : i32
    %8 = vector.broadcast %c1_i32 : i32 to vector<8x256xi32>
    %9 = arith.cmpi sge, %3, %8 : vector<8x256xi32>
    %c14_i32 = arith.constant 14 : i32
    %10 = vector.broadcast %c14_i32 : i32 to vector<8x256xi32>
    %11 = arith.cmpi sle, %3, %10 : vector<8x256xi32>
    %c16_i32_1 = arith.constant 16 : i32
    %12 = tpu.dynamic_rotate %0 by %c16_i32_1 dim 1 : vector<8x256xf32>, i32 -> vector<8x256xf32>
    %cst = arith.constant 0.000000e+00 : f32
    %13 = vector.broadcast %cst : f32 to vector<8x256xf32>
    %14 = arith.select %5, %12, %13 : vector<8x256xi1>, vector<8x256xf32>
    %c240_i32_2 = arith.constant 240 : i32
    %15 = tpu.dynamic_rotate %0 by %c240_i32_2 dim 1 : vector<8x256xf32>, i32 -> vector<8x256xf32>
    %cst_3 = arith.constant 0.000000e+00 : f32
    %16 = vector.broadcast %cst_3 : f32 to vector<8x256xf32>
    %17 = arith.select %7, %15, %16 : vector<8x256xi1>, vector<8x256xf32>
    %cst_4 = arith.constant 2.500000e-01 : f32
    %18 = vector.broadcast %cst_4 : f32 to vector<8x256xf32>
    %19 = arith.mulf %18, %14 : vector<8x256xf32>
    %cst_5 = arith.constant 5.000000e-01 : f32
    %20 = vector.broadcast %cst_5 : f32 to vector<8x256xf32>
    %21 = arith.mulf %20, %0 : vector<8x256xf32>
    %22 = arith.addf %19, %21 : vector<8x256xf32>
    %cst_6 = arith.constant 2.500000e-01 : f32
    %23 = vector.broadcast %cst_6 : f32 to vector<8x256xf32>
    %24 = arith.mulf %23, %17 : vector<8x256xf32>
    %25 = arith.addf %22, %24 : vector<8x256xf32>
    %cst_7 = arith.constant 0.353553385 : f32
    %26 = vector.broadcast %cst_7 : f32 to vector<8x256xf32>
    %27 = arith.mulf %26, %14 : vector<8x256xf32>
    %cst_8 = arith.constant -0.353553385 : f32
    %28 = vector.broadcast %cst_8 : f32 to vector<8x256xf32>
    %29 = arith.mulf %28, %17 : vector<8x256xf32>
    %30 = arith.addf %27, %29 : vector<8x256xf32>
    %cst_9 = arith.constant -2.500000e-01 : f32
    %31 = vector.broadcast %cst_9 : f32 to vector<8x256xf32>
    %32 = arith.mulf %31, %14 : vector<8x256xf32>
    %cst_10 = arith.constant 5.000000e-01 : f32
    %33 = vector.broadcast %cst_10 : f32 to vector<8x256xf32>
    %34 = arith.mulf %33, %0 : vector<8x256xf32>
    %35 = arith.addf %32, %34 : vector<8x256xf32>
    %cst_11 = arith.constant -2.500000e-01 : f32
    %36 = vector.broadcast %cst_11 : f32 to vector<8x256xf32>
    %37 = arith.mulf %36, %17 : vector<8x256xf32>
    %38 = arith.addf %35, %37 : vector<8x256xf32>
    %c1_i32_12 = arith.constant 1 : i32
    %39 = tpu.dynamic_rotate %25 by %c1_i32_12 dim 1 : vector<8x256xf32>, i32 -> vector<8x256xf32>
    %cst_13 = arith.constant 0.000000e+00 : f32
    %40 = vector.broadcast %cst_13 : f32 to vector<8x256xf32>
    %41 = arith.select %9, %39, %40 : vector<8x256xi1>, vector<8x256xf32>
    %c255_i32 = arith.constant 255 : i32
    %42 = tpu.dynamic_rotate %25 by %c255_i32 dim 1 : vector<8x256xf32>, i32 -> vector<8x256xf32>
    %cst_14 = arith.constant 0.000000e+00 : f32
    %43 = vector.broadcast %cst_14 : f32 to vector<8x256xf32>
    %44 = arith.select %11, %42, %43 : vector<8x256xi1>, vector<8x256xf32>
    %cst_15 = arith.constant 2.500000e-01 : f32
    %45 = vector.broadcast %cst_15 : f32 to vector<8x256xf32>
    %46 = arith.mulf %45, %41 : vector<8x256xf32>
    %cst_16 = arith.constant 5.000000e-01 : f32
    %47 = vector.broadcast %cst_16 : f32 to vector<8x256xf32>
    %48 = arith.mulf %47, %25 : vector<8x256xf32>
    %49 = arith.addf %46, %48 : vector<8x256xf32>
    %cst_17 = arith.constant 2.500000e-01 : f32
    %50 = vector.broadcast %cst_17 : f32 to vector<8x256xf32>
    %51 = arith.mulf %50, %44 : vector<8x256xf32>
    %52 = arith.addf %49, %51 : vector<8x256xf32>
    %cst_18 = arith.constant 0.353553385 : f32
    %53 = vector.broadcast %cst_18 : f32 to vector<8x256xf32>
    %54 = arith.mulf %53, %41 : vector<8x256xf32>
    %cst_19 = arith.constant -0.353553385 : f32
    %55 = vector.broadcast %cst_19 : f32 to vector<8x256xf32>
    %56 = arith.mulf %55, %44 : vector<8x256xf32>
    %57 = arith.addf %54, %56 : vector<8x256xf32>
    %cst_20 = arith.constant -2.500000e-01 : f32
    %58 = vector.broadcast %cst_20 : f32 to vector<8x256xf32>
    %59 = arith.mulf %58, %41 : vector<8x256xf32>
    %cst_21 = arith.constant 5.000000e-01 : f32
    %60 = vector.broadcast %cst_21 : f32 to vector<8x256xf32>
    %61 = arith.mulf %60, %25 : vector<8x256xf32>
    %62 = arith.addf %59, %61 : vector<8x256xf32>
    %cst_22 = arith.constant -2.500000e-01 : f32
    %63 = vector.broadcast %cst_22 : f32 to vector<8x256xf32>
    %64 = arith.mulf %63, %44 : vector<8x256xf32>
    %65 = arith.addf %62, %64 : vector<8x256xf32>
    %c1_i32_23 = arith.constant 1 : i32
    %66 = tpu.dynamic_rotate %30 by %c1_i32_23 dim 1 : vector<8x256xf32>, i32 -> vector<8x256xf32>
    %cst_24 = arith.constant 0.000000e+00 : f32
    %67 = vector.broadcast %cst_24 : f32 to vector<8x256xf32>
    %68 = arith.select %9, %66, %67 : vector<8x256xi1>, vector<8x256xf32>
    %c255_i32_25 = arith.constant 255 : i32
    %69 = tpu.dynamic_rotate %30 by %c255_i32_25 dim 1 : vector<8x256xf32>, i32 -> vector<8x256xf32>
    %cst_26 = arith.constant 0.000000e+00 : f32
    %70 = vector.broadcast %cst_26 : f32 to vector<8x256xf32>
    %71 = arith.select %11, %69, %70 : vector<8x256xi1>, vector<8x256xf32>
    %cst_27 = arith.constant 2.500000e-01 : f32
    %72 = vector.broadcast %cst_27 : f32 to vector<8x256xf32>
    %73 = arith.mulf %72, %68 : vector<8x256xf32>
    %cst_28 = arith.constant 5.000000e-01 : f32
    %74 = vector.broadcast %cst_28 : f32 to vector<8x256xf32>
    %75 = arith.mulf %74, %30 : vector<8x256xf32>
    %76 = arith.addf %73, %75 : vector<8x256xf32>
    %cst_29 = arith.constant 2.500000e-01 : f32
    %77 = vector.broadcast %cst_29 : f32 to vector<8x256xf32>
    %78 = arith.mulf %77, %71 : vector<8x256xf32>
    %79 = arith.addf %76, %78 : vector<8x256xf32>
    %cst_30 = arith.constant 0.353553385 : f32
    %80 = vector.broadcast %cst_30 : f32 to vector<8x256xf32>
    %81 = arith.mulf %80, %68 : vector<8x256xf32>
    %cst_31 = arith.constant -0.353553385 : f32
    %82 = vector.broadcast %cst_31 : f32 to vector<8x256xf32>
    %83 = arith.mulf %82, %71 : vector<8x256xf32>
    %84 = arith.addf %81, %83 : vector<8x256xf32>
    %cst_32 = arith.constant -2.500000e-01 : f32
    %85 = vector.broadcast %cst_32 : f32 to vector<8x256xf32>
    %86 = arith.mulf %85, %68 : vector<8x256xf32>
    %cst_33 = arith.constant 5.000000e-01 : f32
    %87 = vector.broadcast %cst_33 : f32 to vector<8x256xf32>
    %88 = arith.mulf %87, %30 : vector<8x256xf32>
    %89 = arith.addf %86, %88 : vector<8x256xf32>
    %cst_34 = arith.constant -2.500000e-01 : f32
    %90 = vector.broadcast %cst_34 : f32 to vector<8x256xf32>
    %91 = arith.mulf %90, %71 : vector<8x256xf32>
    %92 = arith.addf %89, %91 : vector<8x256xf32>
    %c1_i32_35 = arith.constant 1 : i32
    %93 = tpu.dynamic_rotate %38 by %c1_i32_35 dim 1 : vector<8x256xf32>, i32 -> vector<8x256xf32>
    %cst_36 = arith.constant 0.000000e+00 : f32
    %94 = vector.broadcast %cst_36 : f32 to vector<8x256xf32>
    %95 = arith.select %9, %93, %94 : vector<8x256xi1>, vector<8x256xf32>
    %c255_i32_37 = arith.constant 255 : i32
    %96 = tpu.dynamic_rotate %38 by %c255_i32_37 dim 1 : vector<8x256xf32>, i32 -> vector<8x256xf32>
    %cst_38 = arith.constant 0.000000e+00 : f32
    %97 = vector.broadcast %cst_38 : f32 to vector<8x256xf32>
    %98 = arith.select %11, %96, %97 : vector<8x256xi1>, vector<8x256xf32>
    %cst_39 = arith.constant 2.500000e-01 : f32
    %99 = vector.broadcast %cst_39 : f32 to vector<8x256xf32>
    %100 = arith.mulf %99, %95 : vector<8x256xf32>
    %cst_40 = arith.constant 5.000000e-01 : f32
    %101 = vector.broadcast %cst_40 : f32 to vector<8x256xf32>
    %102 = arith.mulf %101, %38 : vector<8x256xf32>
    %103 = arith.addf %100, %102 : vector<8x256xf32>
    %cst_41 = arith.constant 2.500000e-01 : f32
    %104 = vector.broadcast %cst_41 : f32 to vector<8x256xf32>
    %105 = arith.mulf %104, %98 : vector<8x256xf32>
    %106 = arith.addf %103, %105 : vector<8x256xf32>
    %cst_42 = arith.constant 0.353553385 : f32
    %107 = vector.broadcast %cst_42 : f32 to vector<8x256xf32>
    %108 = arith.mulf %107, %95 : vector<8x256xf32>
    %cst_43 = arith.constant -0.353553385 : f32
    %109 = vector.broadcast %cst_43 : f32 to vector<8x256xf32>
    %110 = arith.mulf %109, %98 : vector<8x256xf32>
    %111 = arith.addf %108, %110 : vector<8x256xf32>
    %cst_44 = arith.constant -2.500000e-01 : f32
    %112 = vector.broadcast %cst_44 : f32 to vector<8x256xf32>
    %113 = arith.mulf %112, %95 : vector<8x256xf32>
    %cst_45 = arith.constant 5.000000e-01 : f32
    %114 = vector.broadcast %cst_45 : f32 to vector<8x256xf32>
    %115 = arith.mulf %114, %38 : vector<8x256xf32>
    %116 = arith.addf %113, %115 : vector<8x256xf32>
    %cst_46 = arith.constant -2.500000e-01 : f32
    %117 = vector.broadcast %cst_46 : f32 to vector<8x256xf32>
    %118 = arith.mulf %117, %98 : vector<8x256xf32>
    %119 = arith.addf %116, %118 : vector<8x256xf32>
    %120 = vector.extract_strided_slice %52 {offsets = [0, 0], sizes = [4, 256], strides = [1, 1]} : vector<8x256xf32> to vector<4x256xf32>
    %121 = vector.extract_strided_slice %57 {offsets = [0, 0], sizes = [4, 256], strides = [1, 1]} : vector<8x256xf32> to vector<4x256xf32>
    %122 = vector.extract_strided_slice %65 {offsets = [0, 0], sizes = [4, 256], strides = [1, 1]} : vector<8x256xf32> to vector<4x256xf32>
    %123 = vector.extract_strided_slice %79 {offsets = [0, 0], sizes = [4, 256], strides = [1, 1]} : vector<8x256xf32> to vector<4x256xf32>
    %124 = vector.extract_strided_slice %84 {offsets = [0, 0], sizes = [4, 256], strides = [1, 1]} : vector<8x256xf32> to vector<4x256xf32>
    %125 = vector.extract_strided_slice %92 {offsets = [0, 0], sizes = [4, 256], strides = [1, 1]} : vector<8x256xf32> to vector<4x256xf32>
    %126 = vector.extract_strided_slice %106 {offsets = [0, 0], sizes = [4, 256], strides = [1, 1]} : vector<8x256xf32> to vector<4x256xf32>
    %127 = vector.extract_strided_slice %111 {offsets = [0, 0], sizes = [4, 256], strides = [1, 1]} : vector<8x256xf32> to vector<4x256xf32>
    %128 = vector.extract_strided_slice %119 {offsets = [0, 0], sizes = [4, 256], strides = [1, 1]} : vector<8x256xf32> to vector<4x256xf32>
    %129 = tpu.concatenate %120, %121, %122, %123, %124, %125, %126, %127, %128 in 0 : vector<4x256xf32>, vector<4x256xf32>, vector<4x256xf32>, vector<4x256xf32>, vector<4x256xf32>, vector<4x256xf32>, vector<4x256xf32>, vector<4x256xf32>, vector<4x256xf32> -> vector<36x256xf32>
    %c0_47 = arith.constant 0 : index
    %c0_48 = arith.constant 0 : index
    %c0_49 = arith.constant 0 : index
    %130 = vector.load %arg2[%c0_47, %c0_48, %c0_49] : memref<2x36x256xf32, #tpu.memory_space<vmem>>, vector<1x36x256xf32>
    %131 = vector.shape_cast %130 : vector<1x36x256xf32> to vector<36x256xf32>
    %132 = vector.shape_cast %129 : vector<36x256xf32> to vector<1x36x256xf32>
    tpu.vector_store %arg2[%c0_47, %c0_48, %c0_49], %132 {strides = array<i32>} : memref<2x36x256xf32, #tpu.memory_space<vmem>>, vector<1x36x256xf32>,
    %133 = vector.extract_strided_slice %52 {offsets = [4, 0], sizes = [4, 256], strides = [1, 1]} : vector<8x256xf32> to vector<4x256xf32>
    %134 = vector.extract_strided_slice %57 {offsets = [4, 0], sizes = [4, 256], strides = [1, 1]} : vector<8x256xf32> to vector<4x256xf32>
    %135 = vector.extract_strided_slice %65 {offsets = [4, 0], sizes = [4, 256], strides = [1, 1]} : vector<8x256xf32> to vector<4x256xf32>
    %136 = vector.extract_strided_slice %79 {offsets = [4, 0], sizes = [4, 256], strides = [1, 1]} : vector<8x256xf32> to vector<4x256xf32>
    %137 = vector.extract_strided_slice %84 {offsets = [4, 0], sizes = [4, 256], strides = [1, 1]} : vector<8x256xf32> to vector<4x256xf32>
    %138 = vector.extract_strided_slice %92 {offsets = [4, 0], sizes = [4, 256], strides = [1, 1]} : vector<8x256xf32> to vector<4x256xf32>
    %139 = vector.extract_strided_slice %106 {offsets = [4, 0], sizes = [4, 256], strides = [1, 1]} : vector<8x256xf32> to vector<4x256xf32>
    %140 = vector.extract_strided_slice %111 {offsets = [4, 0], sizes = [4, 256], strides = [1, 1]} : vector<8x256xf32> to vector<4x256xf32>
    %141 = vector.extract_strided_slice %119 {offsets = [4, 0], sizes = [4, 256], strides = [1, 1]} : vector<8x256xf32> to vector<4x256xf32>
    %142 = tpu.concatenate %133, %134, %135, %136, %137, %138, %139, %140, %141 in 0 : vector<4x256xf32>, vector<4x256xf32>, vector<4x256xf32>, vector<4x256xf32>, vector<4x256xf32>, vector<4x256xf32>, vector<4x256xf32>, vector<4x256xf32>, vector<4x256xf32> -> vector<36x256xf32>
    %c1 = arith.constant 1 : index
    %c0_50 = arith.constant 0 : index
    %c0_51 = arith.constant 0 : index
    %143 = vector.load %arg2[%c1, %c0_50, %c0_51] : memref<2x36x256xf32, #tpu.memory_space<vmem>>, vector<1x36x256xf32>
    %144 = vector.shape_cast %143 : vector<1x36x256xf32> to vector<36x256xf32>
    %145 = vector.shape_cast %142 : vector<36x256xf32> to vector<1x36x256xf32>
    tpu.vector_store %arg2[%c1, %c0_50, %c0_51], %145 {strides = array<i32>} : memref<2x36x256xf32, #tpu.memory_space<vmem>>, vector<1x36x256xf32>,
    return
  }
  func.func @transform_0(%arg0: i32) -> (i32, i32) {
    %c0_i32 = arith.constant 0 : i32
    %c0_i32_0 = arith.constant 0 : i32
    return %arg0, %c0_i32 : i32, i32
  }
  func.func @transform_1(%arg0: i32) -> (i32, i32, i32) {
    %c0_i32 = arith.constant 0 : i32
    %c0_i32_0 = arith.constant 0 : i32
    %c0_i32_1 = arith.constant 0 : i32
    return %arg0, %c0_i32, %c0_i32_0 : i32, i32, i32
  }
}

</mosaic_0001>

<llo_original>
// kernel: tpu_custom_call.1
$region0: #{tpu_custom_call.1}
  #allocation0 [shape = 'u32[]', space=smem, size = 0x4, offset = 0x4, fixed_abs, tag = 'smem constant byte address 0x4 - core index']
  #allocation1 [shape = 'u32[144,128]{1,0:T(1,128)}', space=vmem, size = 0x12000, scoped, tag = 'internal scratch']
  %s0 = inlined_call_operand.hbm [shape: f32[8,256], index: 0, kind: input, shape index: {}]
  %s1 = inlined_call_operand.vmem [shape: f32[2,36,256], index: 1, kind: output, shape index: {}]
  %s2 = sld [smem:[#allocation0]]
  $region18: #{tpu_custom_call.1} parent=0
    _
  %s4 = ssub.s32 1, %s2
  %s5 = scalar_select 0, %s4, %s2
  $region1: #{tpu_custom_call.1} parent=0
    #allocation2 [shape = 'u8[8192]{0}', space=vmem, size = 0x2000, scoped, tag = 'input window, operand 0, single buffered']
    #allocation3 [shape = 's32[1]{0}', space=sflag, size = 0x4, scoped, tag = 'scoped memory for tpu_custom_call.1']
    %6 = vsyncpa [#allocation3], 0
    // Predicated region
    $region2: #{tpu_custom_call.1} parent=1 // pred_check
      _
    $region3: #{tpu_custom_call.1} parent=1 // pred_check_branch
      %8 = sbr.rel (0) target = $region5
    $region4: #{tpu_custom_call.1} parent=1 // pred_region
      %s10 = ssub.s32 256, 256
      %11 = vsyncadd [#allocation3], %s10
      %s13 = sshll.u32 [#allocation2], 4
      %s14 = int_to_ptr.vmem [resolvable:$true] %s13
      %16 = dma.hbm_to_vmem [thread:$0]  %s0, 256, %s14, [#allocation3]
    $region5: #{tpu_custom_call.1} parent=1 // pred_fallthru
      _
    // Predicated region
    $region6: #{tpu_custom_call.1} parent=1 // pred_check
      _
    $region7: #{tpu_custom_call.1} parent=1 // pred_check_branch
      %18 = sbr.rel (0) target = $region9
    $region8: #{tpu_custom_call.1} parent=1 // pred_region
      %19 = dma.done [#allocation3], 256
    $region9: #{tpu_custom_call.1} parent=1 // pred_fallthru
      _
    %v20 = vld [vmem:[#allocation2] sm:$0xff]
    %v21 = vld [vmem:[#allocation2 + $0x8] sm:$0xff]
    %v22 = vlaneseq
    %v23 = vand.u32 %v22, 127
    %v24 = vadd.s32 %v23, 128
    %v25 = vand.u32 %v23, 15
    %v26 = vand.u32 %v24, 15
    %vm27 = vcmp.ge.s32.totalorder %v23, 16
    %vm28 = vcmp.ge.s32.totalorder %v24, 16
    %vm29 = vcmp.lt.s32.totalorder %v23, 240
    %vm30 = vcmp.lt.s32.totalorder %v24, 240
    %vm31 = vcmp.ge.s32.totalorder %v25, 1
    %vm32 = vcmp.ge.s32.totalorder %v26, 1
    %vm33 = vcmp.le.s32.totalorder %v25, 14
    %vm34 = vcmp.le.s32.totalorder %v26, 14
    %35 = vrot.lane.b32.xlu0 %v20, 16
    %v36 = vpop.permute.xlu0 %35
    %37 = vrot.lane.b32.xlu0 %v21, 16
    %v38 = vpop.permute.xlu0 %37
    %vm39 = vcmp.lt.s32.totalorder %v23, 16
    %v40 = vsel %vm39, %v36, %v38
    %v41 = vsel %vm39, %v38, %v36
    %v42 = vsel %vm27, %v41, 0.0
    %v43 = vsel %vm28, %v40, 0.0
    %44 = vrot.lane.b32.xlu0 %v20, 112
    %v45 = vpop.permute.xlu0 %44
    %46 = vrot.lane.b32.xlu0 %v21, 112
    %v47 = vpop.permute.xlu0 %46
    %vm48 = vcmp.lt.s32.totalorder %v23, 112
    %v49 = vsel %vm48, %v45, %v47
    %v50 = vsel %vm48, %v47, %v45
    %v51 = vsel %vm29, %v49, 0.0
    %v52 = vsel %vm30, %v50, 0.0
    %v53 = vmul.f32 %v42, 0.25
    %v54 = vmul.f32 %v43, 0.25
    %v55 = vmul.f32 %v20, 0.5
    %v56 = vmul.f32 %v21, 0.5
    %v57 = vadd.f32 %v53, %v55
    %v58 = vadd.f32 %v54, %v56
    %v59 = vmul.f32 %v51, 0.25
    %v60 = vmul.f32 %v52, 0.25
    %v61 = vadd.f32 %v57, %v59
    %v62 = vadd.f32 %v58, %v60
    %v63 = vmul.f32 %v42, 0.35355338
    %v64 = vmul.f32 %v43, 0.35355338
    %v65 = vmul.f32 %v51, -0.35355338
    %v66 = vmul.f32 %v52, -0.35355338
    %v67 = vadd.f32 %v63, %v65
    %v68 = vadd.f32 %v64, %v66
    %v69 = vmul.f32 %v42, -0.25
    %v70 = vmul.f32 %v43, -0.25
    %v71 = vadd.f32 %v69, %v55
    %v72 = vadd.f32 %v70, %v56
    %v73 = vmul.f32 %v51, -0.25
    %v74 = vmul.f32 %v52, -0.25
    %v75 = vadd.f32 %v71, %v73
    %v76 = vadd.f32 %v72, %v74
    %77 = vrot.lane.b32.xlu0 %v61, 1
    %v78 = vpop.permute.xlu0 %77
    %79 = vrot.lane.b32.xlu0 %v62, 1
    %v80 = vpop.permute.xlu0 %79
    %vm81 = vcmp.lt.s32.totalorder %v23, 1
    %v82 = vsel %vm81, %v78, %v80
    %v83 = vsel %vm81, %v80, %v78
    %v84 = vsel %vm31, %v83, 0.0
    %v85 = vsel %vm32, %v82, 0.0
    %86 = vrot.lane.b32.xlu0 %v61, 127
    %v87 = vpop.permute.xlu0 %86
    %88 = vrot.lane.b32.xlu0 %v62, 127
    %v89 = vpop.permute.xlu0 %88
    %vm90 = vcmp.lt.s32.totalorder %v23, 127
    %v91 = vsel %vm90, %v87, %v89
    %v92 = vsel %vm90, %v89, %v87
    %v93 = vsel %vm33, %v91, 0.0
    %v94 = vsel %vm34, %v92, 0.0
    %v95 = vmul.f32 %v84, 0.25
    %v96 = vmul.f32 %v85, 0.25
    %v97 = vmul.f32 %v61, 0.5
    %v98 = vmul.f32 %v62, 0.5
    %v99 = vadd.f32 %v95, %v97
    %v100 = vadd.f32 %v96, %v98
    %v101 = vmul.f32 %v93, 0.25
    %v102 = vmul.f32 %v94, 0.25
    %v103 = vadd.f32 %v99, %v101
    %v104 = vadd.f32 %v100, %v102
    %v105 = vmul.f32 %v84, 0.35355338
    %v106 = vmul.f32 %v85, 0.35355338
    %v107 = vmul.f32 %v93, -0.35355338
    %v108 = vmul.f32 %v94, -0.35355338
    %v109 = vadd.f32 %v105, %v107
    %v110 = vadd.f32 %v106, %v108
    %v111 = vmul.f32 %v84, -0.25
    %v112 = vmul.f32 %v85, -0.25
    %v113 = vadd.f32 %v111, %v97
    %v114 = vadd.f32 %v112, %v98
    %v115 = vmul.f32 %v93, -0.25
    %v116 = vmul.f32 %v94, -0.25
    %v117 = vadd.f32 %v113, %v115
    %v118 = vadd.f32 %v114, %v116
    %119 = vrot.lane.b32.xlu0 %v67, 1
    %v120 = vpop.permute.xlu0 %119
    %121 = vrot.lane.b32.xlu0 %v68, 1
    %v122 = vpop.permute.xlu0 %121
    %v123 = vsel %vm81, %v120, %v122
    %v124 = vsel %vm81, %v122, %v120
    %v125 = vsel %vm31, %v124, 0.0
    %v126 = vsel %vm32, %v123, 0.0
    %127 = vrot.lane.b32.xlu0 %v67, 127
    %v128 = vpop.permute.xlu0 %127
    %129 = vrot.lane.b32.xlu0 %v68, 127
    %v130 = vpop.permute.xlu0 %129
    %v131 = vsel %vm90, %v128, %v130
    %v132 = vsel %vm90, %v130, %v128
    %v133 = vsel %vm33, %v131, 0.0
    %v134 = vsel %vm34, %v132, 0.0
    %v135 = vmul.f32 %v125, 0.25
    %v136 = vmul.f32 %v126, 0.25
    %v137 = vmul.f32 %v67, 0.5
    %v138 = vmul.f32 %v68, 0.5
    %v139 = vadd.f32 %v135, %v137
    %v140 = vadd.f32 %v136, %v138
    %v141 = vmul.f32 %v133, 0.25
    %v142 = vmul.f32 %v134, 0.25
    %v143 = vadd.f32 %v139, %v141
    %v144 = vadd.f32 %v140, %v142
    %v145 = vmul.f32 %v125, 0.35355338
    %v146 = vmul.f32 %v126, 0.35355338
    %v147 = vmul.f32 %v133, -0.35355338
    %v148 = vmul.f32 %v134, -0.35355338
    %v149 = vadd.f32 %v145, %v147
    %v150 = vadd.f32 %v146, %v148
    %v151 = vmul.f32 %v125, -0.25
    %v152 = vmul.f32 %v126, -0.25
    %v153 = vadd.f32 %v151, %v137
    %v154 = vadd.f32 %v152, %v138
    %v155 = vmul.f32 %v133, -0.25
    %v156 = vmul.f32 %v134, -0.25
    %v157 = vadd.f32 %v153, %v155
    %v158 = vadd.f32 %v154, %v156
    %159 = vrot.lane.b32.xlu0 %v75, 1
    %v160 = vpop.permute.xlu0 %159
    %161 = vrot.lane.b32.xlu0 %v76, 1
    %v162 = vpop.permute.xlu0 %161
    %v163 = vsel %vm81, %v160, %v162
    %v164 = vsel %vm81, %v162, %v160
    %v165 = vsel %vm31, %v164, 0.0
    %v166 = vsel %vm32, %v163, 0.0
    %167 = vrot.lane.b32.xlu0 %v75, 127
    %v168 = vpop.permute.xlu0 %167
    %169 = vrot.lane.b32.xlu0 %v76, 127
    %v170 = vpop.permute.xlu0 %169
    %v171 = vsel %vm90, %v168, %v170
    %v172 = vsel %vm90, %v170, %v168
    %v173 = vsel %vm33, %v171, 0.0
    %v174 = vsel %vm34, %v172, 0.0
    %v175 = vmul.f32 %v165, 0.25
    %v176 = vmul.f32 %v166, 0.25
    %v177 = vmul.f32 %v75, 0.5
    %v178 = vmul.f32 %v76, 0.5
    %v179 = vadd.f32 %v175, %v177
    %v180 = vadd.f32 %v176, %v178
    %v181 = vmul.f32 %v173, 0.25
    %v182 = vmul.f32 %v174, 0.25
    %v183 = vadd.f32 %v179, %v181
    %v184 = vadd.f32 %v180, %v182
    %v185 = vmul.f32 %v165, 0.35355338
    %v186 = vmul.f32 %v166, 0.35355338
    %v187 = vmul.f32 %v173, -0.35355338
    %v188 = vmul.f32 %v174, -0.35355338
    %v189 = vadd.f32 %v185, %v187
    %v190 = vadd.f32 %v186, %v188
    %v191 = vmul.f32 %v165, -0.25
    %v192 = vmul.f32 %v166, -0.25
    %v193 = vadd.f32 %v191, %v177
    %v194 = vadd.f32 %v192, %v178
    %v195 = vmul.f32 %v173, -0.25
    %v196 = vmul.f32 %v174, -0.25
    %v197 = vadd.f32 %v193, %v195
    %v198 = vadd.f32 %v194, %v196
    %v201 = vrot.slane %v109, 4
    %v202 = vrot.slane %v110, 4
    %v207 = vrot.slane %v143, 4
    %v208 = vrot.slane %v144, 4
    %v213 = vrot.slane %v157, 4
    %v214 = vrot.slane %v158, 4
    %v219 = vrot.slane %v189, 4
    %v220 = vrot.slane %v190, 4
    %vm223 = vcmask 1043456
    %v224 = vsel %vm223, %v103, %v201
    %v225 = vsel %vm223, %v104, %v202
    %v226 = vsel %vm223, %v117, %v207
    %v227 = vsel %vm223, %v118, %v208
    %v228 = vsel %vm223, %v149, %v213
    %v229 = vsel %vm223, %v150, %v214
    %v230 = vsel %vm223, %v183, %v219
    %v231 = vsel %vm223, %v184, %v220
    %232 = vst [vmem:[%s1] sm:$0xff] %v224
    %233 = vst [vmem:[%s1 + $0x8] sm:$0xff] %v225
    %234 = vst [vmem:[%s1 + $0x10] sm:$0xff] %v226
    %235 = vst [vmem:[%s1 + $0x18] sm:$0xff] %v227
    %236 = vst [vmem:[%s1 + $0x20] sm:$0xff] %v228
    %237 = vst [vmem:[%s1 + $0x28] sm:$0xff] %v229
    %238 = vst [vmem:[%s1 + $0x30] sm:$0xff] %v230
    %239 = vst [vmem:[%s1 + $0x38] sm:$0xff] %v231
    %240 = vst [vmem:[%s1 + $0x40] sm:$0xf] %v197
    %241 = vst [vmem:[%s1 + $0x48] sm:$0xf] %v198
    %v244 = vrot.slane %v103, 4
    %v245 = vrot.slane %v104, 4
    %v250 = vrot.slane %v117, 4
    %v251 = vrot.slane %v118, 4
    %v256 = vrot.slane %v149, 4
    %v257 = vrot.slane %v150, 4
    %v262 = vrot.slane %v183, 4
    %v263 = vrot.slane %v184, 4
    %v268 = vrot.slane %v197, 4
    %v269 = vrot.slane %v198, 4
    %v272 = vsel %vm223, %v244, %v109
    %v273 = vsel %vm223, %v245, %v110
    %v274 = vsel %vm223, %v250, %v143
    %v275 = vsel %vm223, %v251, %v144
    %v276 = vsel %vm223, %v256, %v157
    %v277 = vsel %vm223, %v257, %v158
    %v278 = vsel %vm223, %v262, %v189
    %v279 = vsel %vm223, %v263, %v190
    %s280 = scalar_lea.vmem %s1, 80
    %281 = vst [vmem:[%s280] sm:$0xff] %v272
    %282 = vst [vmem:[%s280 + $0x8] sm:$0xff] %v273
    %283 = vst [vmem:[%s280 + $0x10] sm:$0xff] %v274
    %284 = vst [vmem:[%s280 + $0x18] sm:$0xff] %v275
    %285 = vst [vmem:[%s280 + $0x20] sm:$0xff] %v276
    %286 = vst [vmem:[%s280 + $0x28] sm:$0xff] %v277
    %287 = vst [vmem:[%s280 + $0x30] sm:$0xff] %v278
    %288 = vst [vmem:[%s280 + $0x38] sm:$0xff] %v279
    %289 = vst [vmem:[%s280 + $0x40] sm:$0xf] %v268
    %290 = vst [vmem:[%s280 + $0x48] sm:$0xf] %v269
    // Predicated region
    $region10: #{tpu_custom_call.1} parent=1 // pred_check
      _
    $region11: #{tpu_custom_call.1} parent=1 // pred_check_branch
      %292 = sbr.rel (0) target = $region13
    $region12: #{tpu_custom_call.1} parent=1 // pred_region
      _
    $region13: #{tpu_custom_call.1} parent=1 // pred_fallthru
      _
    // Predicated region
    $region14: #{tpu_custom_call.1} parent=1 // pred_check
      _
    $region15: #{tpu_custom_call.1} parent=1 // pred_check_branch
      %294 = sbr.rel (0) target = $region17
    $region16: #{tpu_custom_call.1} parent=1 // pred_region
      _
    $region17: #{tpu_custom_call.1} parent=1 // pred_fallthru
      _
    %295 = vsyncpa [#allocation3], 1

</llo_original>
